<compile_context>
chip_gen: v7x
topology: tpu7x:2x2x1
jax: 0.10.0
libtpu: 0.0.40
codegen_flags: <defaults>
</compile_context>

<pallas_src>
import functools

import numpy as np
import jax
import jax.numpy as jnp
from jax.experimental import pallas as pl
from jax.experimental.pallas import tpu as pltpu

# The torch module picks shift_direction = (random.random() > 0.5) * 2 - 1 at init.
# Fixed here for determinism; both +1 and -1 are supported (and both are tested).
SHIFT_DIRECTION = 1


def _derive_o_shifts(O, K, s):
    """For each k'-slice of the einsum output, derive the cyclic O-shift implied by the
    roll(+s)/sum(K)/roll(+s) sequence: y[o] = sum_{k'} T_{k'}[(o - shift_{k'}) % O]."""
    OK = O * K
    shifts = {}
    for o in range(O):
        base = (o - s) % O
        for k in range(K):
            p = (base * K + k - s) % OK
            op, kp = p // K, p % K
            shifts.setdefault(kp, set()).add((o - op) % O)
    assert len(shifts) == K and all(len(v) == 1 for v in shifts.values())
    return {kp: next(iter(v)) for kp, v in shifts.items()}


def _kernel(x_ref, w_ref, o_ref, *, BM, O, R, d):
    # x_ref: (1, S, J)  flat rows: groups of R=N+1 rows per (m, o); row 0 of a group = 0.
    # w_ref: (K=2, 3, J, L)  weights per (k', tap).
    # o_ref: (1, S, L) f32.
    xf = x_ref[0]                                   # (S, J)

    # Row-shifted views for the 3 conv taps.  Boundary rows that wrap land on zero pad
    # rows or on discarded pad output rows.  (jnp.roll keeps unambiguous semantics; it
    # lowers to two slices + concat, cheap next to the MXU work here.)
    xm = jnp.roll(xf, 1, axis=0)                    # xm[r] = xf[r-1]
    xp = jnp.roll(xf, -1, axis=0)                   # xp[r] = xf[r+1]

    f32 = jnp.float32
    # Per-tap accumulating MXU dots with f32 accumulation (no (S, 3J) lane concat).
    u0 = (jnp.dot(xm, w_ref[0, 0], preferred_element_type=f32)
          + jnp.dot(xf, w_ref[0, 1], preferred_element_type=f32)
          + jnp.dot(xp, w_ref[0, 2], preferred_element_type=f32))
    u1 = (jnp.dot(xm, w_ref[1, 0], preferred_element_type=f32)
          + jnp.dot(xf, w_ref[1, 1], preferred_element_type=f32)
          + jnp.dot(xp, w_ref[1, 2], preferred_element_type=f32))

    G = O * R
    dt = o_ref.dtype
    if d == 0:
        o_ref[0] = (u0 + u1).astype(dt)
    else:
        hd = d * R                  # rows of each segment fed by the wrapped tail of u1
        ht = (O - d) * R            # split point inside each m-segment of u1
        for b in range(BM):         # static unroll; every boundary is a multiple of R=8
            base = b * G
            o_ref[0, base:base + hd] = (
                u0[base:base + hd] + u1[base + ht:base + G]).astype(dt)
            o_ref[0, base + hd:base + G] = (
                u0[base + hd:base + G] + u1[base:base + ht]).astype(dt)


def _weight_spec(K, J, L):
    idx = lambda i: (0, 0, 0, 0)
    try:
        # Constant block across the grid -> single buffer is enough (saves VMEM).
        return pl.BlockSpec((K, 3, J, L), idx, pipeline_mode=pl.Buffered(1))
    except Exception:  # older API without pipeline_mode / Buffered(1): fall back.
        return pl.BlockSpec((K, 3, J, L), idx)


@functools.partial(jax.jit, static_argnames=("shift_direction", "block_m", "compute_dtype"))
def kernel_generated_6_forward(x, weight, shift_direction=SHIFT_DIRECTION,
                               block_m=None, compute_dtype=jnp.bfloat16):
    """x: (M, J, O, N) float32; weight: (J, 3, L, K=2). Returns (M, L, O, N) float32."""
    M, J, O, N = x.shape
    Jw, KS, L, K = weight.shape
    assert Jw == J and KS == 3 and K == 2

    R = N + 1                                        # rows per (m, o) group (zero pad row 0)
    if block_m is None:
        block_m = next(bm for bm in (16, 8, 4, 2, 1) if M % bm == 0)
    BM = block_m
    S = BM * O * R

    shifts = _derive_o_shifts(O, K, shift_direction)
    r0, r1 = shifts[0], shifts[1]
    d = (r1 - r0) % O

    # Cast before the transpose/pad glue: relayout moves half the bytes, pad fuses in.
    cd = compute_dtype if compute_dtype is not None else x.dtype
    x_c = x.astype(cd)
    w_c = weight.astype(cd)

    # ---- XLA glue: layout plumbing only ----
    x_t = jnp.transpose(x_c, (0, 2, 3, 1))                      # (M, O, N, J)
    x_p = jnp.pad(x_t, ((0, 0), (0, 0), (1, 0), (0, 0)))        # (M, O, R, J), row 0 = 0
    x_f = x_p.reshape(M // BM, S, J)                             # flat aligned row layout
    w_r = jnp.transpose(w_c, (3, 1, 0, 2))                       # (K, 3, J, L)

    itemsize = jnp.dtype(cd).itemsize
    flops = 2 * (M * O * R) * (3 * J) * L * K
    bytes_accessed = (M * O * R * J * itemsize + K * 3 * J * L * itemsize
                      + M * O * R * L * 4)

    kernel = functools.partial(_kernel, BM=BM, O=O, R=R, d=d)

    out_f = pl.pallas_call(
        kernel,
        out_shape=jax.ShapeDtypeStruct((M // BM, S, L), jnp.float32),
        grid_spec=pltpu.PrefetchScalarGridSpec(
            num_scalar_prefetch=0,
            grid=(M // BM,),
            in_specs=[
                pl.BlockSpec((1, S, J), lambda i: (i, 0, 0)),    # x block (single fetch)
                _weight_spec(K, J, L),                            # resident weights
            ],
            out_specs=pl.BlockSpec((1, S, L), lambda i: (i, 0, 0)),
        ),
        compiler_params=pltpu.CompilerParams(
            dimension_semantics=("parallel",),
            vmem_limit_bytes=40 * 1024 * 1024),
        cost_estimate=pl.CostEstimate(flops=int(flops), transcendentals=0,
                                      bytes_accessed=int(bytes_accessed)),
    )(x_f, w_r)

    # Drop pad rows, apply the absolute r0 roll, and go to the PyTorch output layout.
    out = out_f.reshape(M, O, R, L)[:, :, 1:, :]                 # (M, O, N, L)
    out = jnp.roll(out, r0, axis=1)
    return jnp.transpose(out, (0, 3, 1, 2))                      # (M, L, O, N)


def reference_forward(x, weight, shift_direction=SHIFT_DIRECTION):
    """Pure-JAX mirror of the literal PyTorch op sequence (for verification)."""
    M, J, O, N = x.shape
    _, KS, L, K = weight.shape
    xpad = jnp.pad(x, ((0, 0), (0, 0), (0, 0), (1, 1)))
    t2 = jnp.stack([xpad[..., i:i + N] for i in range(KS)], axis=-1)   # (M,J,O,N,KS)
    t3 = jnp.einsum('mjoni,jilk->monlk', t2, weight)                   # (M,O,N,L,K)
    t4 = jnp.transpose(t3, (0, 2, 3, 1, 4)).reshape(M, N, L, O * K)
    t4 = jnp.roll(t4, shift_direction, axis=3)
    t4 = t4.reshape(M, N, L, O, K).sum(axis=4)
    t5 = jnp.roll(t4, shift_direction, axis=3)
    return jnp.transpose(t5, (0, 2, 3, 1))                             # (M,L,O,N)


if __name__ == "__main__":
    # Small shapes consistent with the module's structure
    # (full-size module uses M=128, J=512, O=7, N=7, L=512, K=2).
    M, J, O, N, L, K = 2, 128, 7, 7, 128, 2
    key = jax.random.PRNGKey(0)
    kx, kw = jax.random.split(key)
    x = jax.random.normal(kx, (M, J, O, N), dtype=jnp.float32)
    weight = jax.random.normal(kw, (J, 3, L, K), dtype=jnp.float32)

    for s in (1, -1):                    # module may pick either shift direction at init
        # Exact-parity path (f32 end to end) vs the literal op-sequence reference.
        y32 = jax.block_until_ready(
            kernel_generated_6_forward(x, weight, shift_direction=s,
                                       compute_dtype=jnp.float32))
        assert y32.shape == (M, L, O, N)
        ref32 = reference_forward(x, weight, shift_direction=s)
        np.testing.assert_allclose(np.asarray(y32), np.asarray(ref32),
                                   rtol=1e-2, atol=1e-2)

        # Default fast path: bf16 MXU inputs + f32 accumulation.  Compared against the
        # same reference evaluated on bf16-quantized inputs: the quantization is the
        # intentional speed/precision trade-off; the kernel bookkeeping itself is exact.
        ybf = jax.block_until_ready(
            kernel_generated_6_forward(x, weight, shift_direction=s))
        xq = x.astype(jnp.bfloat16).astype(jnp.float32)
        wq = weight.astype(jnp.bfloat16).astype(jnp.float32)
        refbf = reference_forward(xq, wq, shift_direction=s)
        np.testing.assert_allclose(np.asarray(ybf), np.asarray(refbf),
                                   rtol=2e-3, atol=2e-3)

    print("KERNEL_OK")
</pallas_src>

<mosaic_0001>
module attributes {stable_mosaic.version = 11 : i64} {
  func.func @_kernel(%arg0: i32, %arg1: memref<1x112x128xf32, #tpu.memory_space<vmem>>, %arg2: memref<2x3x128x128xf32, #tpu.memory_space<vmem>>, %arg3: memref<1x112x128xf32, #tpu.memory_space<vmem>>) attributes {dimension_semantics = [#tpu.dimension_semantics<parallel>], iteration_bounds = array<i64: 1>, scalar_prefetch = 0 : i64, scratch_operands = 0 : i64, tpu.core_type = #tpu.core_type<tc>, window_params = [{transform_indices = @transform_0, window_bounds = array<i64: 1, 112, 128>}, {pipeline_mode = #tpu.pipeline_mode<synchronous>, transform_indices = @transform_1, window_bounds = array<i64: 2, 3, 128, 128>}, {transform_indices = @transform_2, window_bounds = array<i64: 1, 112, 128>}]} {
    %c0 = arith.constant 0 : index
    %c0_0 = arith.constant 0 : index
    %c0_1 = arith.constant 0 : index
    %0 = vector.load %arg1[%c0, %c0_0, %c0_1] : memref<1x112x128xf32, #tpu.memory_space<vmem>>, vector<1x112x128xf32>
    %1 = vector.shape_cast %0 : vector<1x112x128xf32> to vector<112x128xf32>
    %2 = vector.extract_strided_slice %1 {offsets = [111, 0], sizes = [1, 128], strides = [1, 1]} : vector<112x128xf32> to vector<1x128xf32>
    %3 = vector.extract_strided_slice %1 {offsets = [0, 0], sizes = [111, 128], strides = [1, 1]} : vector<112x128xf32> to vector<111x128xf32>
    %4 = tpu.concatenate %2, %3 in 0 : vector<1x128xf32>, vector<111x128xf32> -> vector<112x128xf32>
    %5 = vector.extract_strided_slice %1 {offsets = [1, 0], sizes = [111, 128], strides = [1, 1]} : vector<112x128xf32> to vector<111x128xf32>
    %6 = vector.extract_strided_slice %1 {offsets = [0, 0], sizes = [1, 128], strides = [1, 1]} : vector<112x128xf32> to vector<1x128xf32>
    %7 = tpu.concatenate %5, %6 in 0 : vector<111x128xf32>, vector<1x128xf32> -> vector<112x128xf32>
    %c0_2 = arith.constant 0 : index
    %c0_3 = arith.constant 0 : index
    %c0_4 = arith.constant 0 : index
    %c0_5 = arith.constant 0 : index
    %8 = vector.load %arg2[%c0_2, %c0_3, %c0_4, %c0_5] : memref<2x3x128x128xf32, #tpu.memory_space<vmem>>, vector<1x1x128x128xf32>
    %9 = vector.shape_cast %8 : vector<1x1x128x128xf32> to vector<128x128xf32>
    %cst = arith.constant dense<0.000000e+00> : vector<112x128xf32>
    %10 = tpu.matmul %4, %9, %cst {dimension_numbers = #tpu.dot_dimension_numbers<[1], [0], [0], [1], [0, 0, 1, 1], [], []>} : vector<112x128xf32>, vector<128x128xf32>, vector<112x128xf32> -> vector<112x128xf32>
    %c0_6 = arith.constant 0 : index
    %c1 = arith.constant 1 : index
    %c0_7 = arith.constant 0 : index
    %c0_8 = arith.constant 0 : index
    %11 = vector.load %arg2[%c0_6, %c1, %c0_7, %c0_8] : memref<2x3x128x128xf32, #tpu.memory_space<vmem>>, vector<1x1x128x128xf32>
    %12 = vector.shape_cast %11 : vector<1x1x128x128xf32> to vector<128x128xf32>
    %cst_9 = arith.constant dense<0.000000e+00> : vector<112x128xf32>
    %13 = tpu.matmul %1, %12, %cst_9 {dimension_numbers = #tpu.dot_dimension_numbers<[1], [0], [0], [1], [0, 0, 1, 1], [], []>} : vector<112x128xf32>, vector<128x128xf32>, vector<112x128xf32> -> vector<112x128xf32>
    %14 = arith.addf %10, %13 : vector<112x128xf32>
    %c0_10 = arith.constant 0 : index
    %c2 = arith.constant 2 : index
    %c0_11 = arith.constant 0 : index
    %c0_12 = arith.constant 0 : index
    %15 = vector.load %arg2[%c0_10, %c2, %c0_11, %c0_12] : memref<2x3x128x128xf32, #tpu.memory_space<vmem>>, vector<1x1x128x128xf32>
    %16 = vector.shape_cast %15 : vector<1x1x128x128xf32> to vector<128x128xf32>
    %cst_13 = arith.constant dense<0.000000e+00> : vector<112x128xf32>
    %17 = tpu.matmul %7, %16, %cst_13 {dimension_numbers = #tpu.dot_dimension_numbers<[1], [0], [0], [1], [0, 0, 1, 1], [], []>} : vector<112x128xf32>, vector<128x128xf32>, vector<112x128xf32> -> vector<112x128xf32>
    %18 = arith.addf %14, %17 : vector<112x128xf32>
    %c1_14 = arith.constant 1 : index
    %c0_15 = arith.constant 0 : index
    %c0_16 = arith.constant 0 : index
    %c0_17 = arith.constant 0 : index
    %19 = vector.load %arg2[%c1_14, %c0_15, %c0_16, %c0_17] : memref<2x3x128x128xf32, #tpu.memory_space<vmem>>, vector<1x1x128x128xf32>
    %20 = vector.shape_cast %19 : vector<1x1x128x128xf32> to vector<128x128xf32>
    %cst_18 = arith.constant dense<0.000000e+00> : vector<112x128xf32>
    %21 = tpu.matmul %4, %20, %cst_18 {dimension_numbers = #tpu.dot_dimension_numbers<[1], [0], [0], [1], [0, 0, 1, 1], [], []>} : vector<112x128xf32>, vector<128x128xf32>, vector<112x128xf32> -> vector<112x128xf32>
    %c1_19 = arith.constant 1 : index
    %c1_20 = arith.constant 1 : index
    %c0_21 = arith.constant 0 : index
    %c0_22 = arith.constant 0 : index
    %22 = vector.load %arg2[%c1_19, %c1_20, %c0_21, %c0_22] : memref<2x3x128x128xf32, #tpu.memory_space<vmem>>, vector<1x1x128x128xf32>
    %23 = vector.shape_cast %22 : vector<1x1x128x128xf32> to vector<128x128xf32>
    %cst_23 = arith.constant dense<0.000000e+00> : vector<112x128xf32>
    %24 = tpu.matmul %1, %23, %cst_23 {dimension_numbers = #tpu.dot_dimension_numbers<[1], [0], [0], [1], [0, 0, 1, 1], [], []>} : vector<112x128xf32>, vector<128x128xf32>, vector<112x128xf32> -> vector<112x128xf32>
    %25 = arith.addf %21, %24 : vector<112x128xf32>
    %c1_24 = arith.constant 1 : index
    %c2_25 = arith.constant 2 : index
    %c0_26 = arith.constant 0 : index
    %c0_27 = arith.constant 0 : index
    %26 = vector.load %arg2[%c1_24, %c2_25, %c0_26, %c0_27] : memref<2x3x128x128xf32, #tpu.memory_space<vmem>>, vector<1x1x128x128xf32>
    %27 = vector.shape_cast %26 : vector<1x1x128x128xf32> to vector<128x128xf32>
    %cst_28 = arith.constant dense<0.000000e+00> : vector<112x128xf32>
    %28 = tpu.matmul %7, %27, %cst_28 {dimension_numbers = #tpu.dot_dimension_numbers<[1], [0], [0], [1], [0, 0, 1, 1], [], []>} : vector<112x128xf32>, vector<128x128xf32>, vector<112x128xf32> -> vector<112x128xf32>
    %29 = arith.addf %25, %28 : vector<112x128xf32>
    %30 = vector.extract_strided_slice %18 {offsets = [0, 0], sizes = [8, 128], strides = [1, 1]} : vector<112x128xf32> to vector<8x128xf32>
    %31 = vector.extract_strided_slice %29 {offsets = [48, 0], sizes = [8, 128], strides = [1, 1]} : vector<112x128xf32> to vector<8x128xf32>
    %32 = arith.addf %30, %31 : vector<8x128xf32>
    %c0_29 = arith.constant 0 : index
    %c0_30 = arith.constant 0 : index
    %c0_31 = arith.constant 0 : index
    %33 = vector.load %arg3[%c0_29, %c0_30, %c0_31] : memref<1x112x128xf32, #tpu.memory_space<vmem>>, vector<1x8x128xf32>
    %34 = vector.shape_cast %33 : vector<1x8x128xf32> to vector<8x128xf32>
    %35 = vector.shape_cast %32 : vector<8x128xf32> to vector<1x8x128xf32>
    tpu.vector_store %arg3[%c0_29, %c0_30, %c0_31], %35 {strides = array<i32>} : memref<1x112x128xf32, #tpu.memory_space<vmem>>, vector<1x8x128xf32>,
    %36 = vector.extract_strided_slice %18 {offsets = [8, 0], sizes = [48, 128], strides = [1, 1]} : vector<112x128xf32> to vector<48x128xf32>
    %37 = vector.extract_strided_slice %29 {offsets = [0, 0], sizes = [48, 128], strides = [1, 1]} : vector<112x128xf32> to vector<48x128xf32>
    %38 = arith.addf %36, %37 : vector<48x128xf32>
    %c0_32 = arith.constant 0 : index
    %c8 = arith.constant 8 : index
    %c0_33 = arith.constant 0 : index
    %39 = vector.load %arg3[%c0_32, %c8, %c0_33] : memref<1x112x128xf32, #tpu.memory_space<vmem>>, vector<1x48x128xf32>
    %40 = vector.shape_cast %39 : vector<1x48x128xf32> to vector<48x128xf32>
    %41 = vector.shape_cast %38 : vector<48x128xf32> to vector<1x48x128xf32>
    tpu.vector_store %arg3[%c0_32, %c8, %c0_33], %41 {strides = array<i32>} : memref<1x112x128xf32, #tpu.memory_space<vmem>>, vector<1x48x128xf32>,
    %42 = vector.extract_strided_slice %18 {offsets = [56, 0], sizes = [8, 128], strides = [1, 1]} : vector<112x128xf32> to vector<8x128xf32>
    %43 = vector.extract_strided_slice %29 {offsets = [104, 0], sizes = [8, 128], strides = [1, 1]} : vector<112x128xf32> to vector<8x128xf32>
    %44 = arith.addf %42, %43 : vector<8x128xf32>
    %c0_34 = arith.constant 0 : index
    %c56 = arith.constant 56 : index
    %c0_35 = arith.constant 0 : index
    %45 = vector.load %arg3[%c0_34, %c56, %c0_35] : memref<1x112x128xf32, #tpu.memory_space<vmem>>, vector<1x8x128xf32>
    %46 = vector.shape_cast %45 : vector<1x8x128xf32> to vector<8x128xf32>
    %47 = vector.shape_cast %44 : vector<8x128xf32> to vector<1x8x128xf32>
    tpu.vector_store %arg3[%c0_34, %c56, %c0_35], %47 {strides = array<i32>} : memref<1x112x128xf32, #tpu.memory_space<vmem>>, vector<1x8x128xf32>,
    %48 = vector.extract_strided_slice %18 {offsets = [64, 0], sizes = [48, 128], strides = [1, 1]} : vector<112x128xf32> to vector<48x128xf32>
    %49 = vector.extract_strided_slice %29 {offsets = [56, 0], sizes = [48, 128], strides = [1, 1]} : vector<112x128xf32> to vector<48x128xf32>
    %50 = arith.addf %48, %49 : vector<48x128xf32>
    %c0_36 = arith.constant 0 : index
    %c64 = arith.constant 64 : index
    %c0_37 = arith.constant 0 : index
    %51 = vector.load %arg3[%c0_36, %c64, %c0_37] : memref<1x112x128xf32, #tpu.memory_space<vmem>>, vector<1x48x128xf32>
    %52 = vector.shape_cast %51 : vector<1x48x128xf32> to vector<48x128xf32>
    %53 = vector.shape_cast %50 : vector<48x128xf32> to vector<1x48x128xf32>
    tpu.vector_store %arg3[%c0_36, %c64, %c0_37], %53 {strides = array<i32>} : memref<1x112x128xf32, #tpu.memory_space<vmem>>, vector<1x48x128xf32>,
    return
  }
  func.func @transform_0(%arg0: i32) -> (i32, i32, i32) {
    %c0_i32 = arith.constant 0 : i32
    %c0_i32_0 = arith.constant 0 : i32
    %c0_i32_1 = arith.constant 0 : i32
    return %arg0, %c0_i32, %c0_i32_0 : i32, i32, i32
  }
  func.func @transform_1(%arg0: i32) -> (i32, i32, i32, i32) {
    %c0_i32 = arith.constant 0 : i32
    %c0_i32_0 = arith.constant 0 : i32
    %c0_i32_1 = arith.constant 0 : i32
    %c0_i32_2 = arith.constant 0 : i32
    %c0_i32_3 = arith.constant 0 : i32
    return %c0_i32, %c0_i32_0, %c0_i32_1, %c0_i32_2 : i32, i32, i32, i32
  }
  func.func @transform_2(%arg0: i32) -> (i32, i32, i32) {
    %c0_i32 = arith.constant 0 : i32
    %c0_i32_0 = arith.constant 0 : i32
    %c0_i32_1 = arith.constant 0 : i32
    return %arg0, %c0_i32, %c0_i32_0 : i32, i32, i32
  }
}

</mosaic_0001>

<llo_original>
// kernel: kernel_generated_6_forward.1
$region0: #{kernel_generated_6_forward.1}
  #allocation0 [shape = 'u32[]', space=smem, size = 0x4, offset = 0x4, fixed_abs, tag = 'smem constant byte address 0x4 - core index']
  #allocation1 [shape = 'u32[144,128]{1,0:T(1,128)}', space=vmem, size = 0x12000, scoped, tag = 'internal scratch']
  %s0 = inlined_call_operand.vmem [shape: f32[1,112,128], index: 0, kind: input, shape index: {}]
  %s1 = inlined_call_operand.vmem [shape: f32[2,3,128,128], index: 1, kind: input, shape index: {}]
  %s2 = inlined_call_operand.vmem [shape: f32[1,112,128], index: 2, kind: output, shape index: {}]
  %s3 = sld [smem:[#allocation0]]
  $region18: #{kernel_generated_6_forward.1} parent=0
    _
  %s5 = ssub.s32 1, %s3
  %s6 = scalar_select 0, %s5, %s3
  // Predicated region
  $region2: #{kernel_generated_6_forward.1} parent=0 // pred_check
    _
  $region3: #{kernel_generated_6_forward.1} parent=0 // pred_check_branch
    %8 = sbr.rel (0) target = $region5
  $region4: #{kernel_generated_6_forward.1} parent=0 // pred_region
    _
  $region5: #{kernel_generated_6_forward.1} parent=0 // pred_fallthru
    _
  // Predicated region
  $region6: #{kernel_generated_6_forward.1} parent=0 // pred_check
    _
  $region7: #{kernel_generated_6_forward.1} parent=0 // pred_check_branch
    %10 = sbr.rel (0) target = $region9
  $region8: #{kernel_generated_6_forward.1} parent=0 // pred_region
    _
  $region9: #{kernel_generated_6_forward.1} parent=0 // pred_fallthru
    _
  %v11 = vld [vmem:[%s0] sm:$0xff]
  %v12 = vld [vmem:[%s0 + $0x8] sm:$0xff]
  %v13 = vld [vmem:[%s0 + $0x10] sm:$0xff]
  %v14 = vld [vmem:[%s0 + $0x18] sm:$0xff]
  %v15 = vld [vmem:[%s0 + $0x20] sm:$0xff]
  %v16 = vld [vmem:[%s0 + $0x28] sm:$0xff]
  %v17 = vld [vmem:[%s0 + $0x30] sm:$0xff]
  %v18 = vld [vmem:[%s0 + $0x38] sm:$0xff]
  %v19 = vld [vmem:[%s0 + $0x40] sm:$0xff]
  %v20 = vld [vmem:[%s0 + $0x48] sm:$0xff]
  %v21 = vld [vmem:[%s0 + $0x50] sm:$0xff]
  %v22 = vld [vmem:[%s0 + $0x58] sm:$0xff]
  %v23 = vld [vmem:[%s0 + $0x60] sm:$0xff]
  %v24 = vld [vmem:[%s0 + $0x68] sm:$0xff]
  %v26 = vrot.slane %v24, 7
  %vm41 = vcmask 1040384
  %v42 = vrot.slane %v11, 7
  %v43 = vrot.slane %v12, 7
  %v44 = vsel %vm41, %v42, %v43
  %v45 = vrot.slane %v13, 7
  %v46 = vsel %vm41, %v43, %v45
  %v47 = vrot.slane %v14, 7
  %v48 = vsel %vm41, %v45, %v47
  %v49 = vrot.slane %v15, 7
  %v50 = vsel %vm41, %v47, %v49
  %v51 = vrot.slane %v16, 7
  %v52 = vsel %vm41, %v49, %v51
  %v53 = vrot.slane %v17, 7
  %v54 = vsel %vm41, %v51, %v53
  %v55 = vrot.slane %v18, 7
  %v56 = vsel %vm41, %v53, %v55
  %v57 = vrot.slane %v19, 7
  %v58 = vsel %vm41, %v55, %v57
  %v59 = vrot.slane %v20, 7
  %v60 = vsel %vm41, %v57, %v59
  %v61 = vrot.slane %v21, 7
  %v62 = vsel %vm41, %v59, %v61
  %v63 = vrot.slane %v22, 7
  %v64 = vsel %vm41, %v61, %v63
  %v65 = vrot.slane %v23, 7
  %v66 = vsel %vm41, %v63, %v65
  %v67 = vsel %vm41, %v65, %v26
  %v82 = vsel %vm41, %v26, %v42
  %vm83 = vcmask 1046528
  %v84 = vrot.slane %v11, 1
  %v85 = vrot.slane %v12, 1
  %v86 = vsel %vm83, %v84, %v85
  %v87 = vrot.slane %v13, 1
  %v88 = vsel %vm83, %v85, %v87
  %v89 = vrot.slane %v14, 1
  %v90 = vsel %vm83, %v87, %v89
  %v91 = vrot.slane %v15, 1
  %v92 = vsel %vm83, %v89, %v91
  %v93 = vrot.slane %v16, 1
  %v94 = vsel %vm83, %v91, %v93
  %v95 = vrot.slane %v17, 1
  %v96 = vsel %vm83, %v93, %v95
  %v97 = vrot.slane %v18, 1
  %v98 = vsel %vm83, %v95, %v97
  %v99 = vrot.slane %v19, 1
  %v100 = vsel %vm83, %v97, %v99
  %v101 = vrot.slane %v20, 1
  %v102 = vsel %vm83, %v99, %v101
  %v103 = vrot.slane %v21, 1
  %v104 = vsel %vm83, %v101, %v103
  %v105 = vrot.slane %v22, 1
  %v106 = vsel %vm83, %v103, %v105
  %v107 = vrot.slane %v23, 1
  %v108 = vsel %vm83, %v105, %v107
  %v109 = vrot.slane %v24, 1
  %v110 = vsel %vm83, %v107, %v109
  %v126 = vsel %vm83, %v109, %v84
  %v127 = vld [vmem:[%s1] sm:$0xff]
  %v128 = vld [vmem:[%s1 + $0x8] sm:$0xff]
  %v129 = vld [vmem:[%s1 + $0x10] sm:$0xff]
  %v130 = vld [vmem:[%s1 + $0x18] sm:$0xff]
  %v131 = vld [vmem:[%s1 + $0x20] sm:$0xff]
  %v132 = vld [vmem:[%s1 + $0x28] sm:$0xff]
  %v133 = vld [vmem:[%s1 + $0x30] sm:$0xff]
  %v134 = vld [vmem:[%s1 + $0x38] sm:$0xff]
  %v135 = vld [vmem:[%s1 + $0x40] sm:$0xff]
  %v136 = vld [vmem:[%s1 + $0x48] sm:$0xff]
  %v137 = vld [vmem:[%s1 + $0x50] sm:$0xff]
  %v138 = vld [vmem:[%s1 + $0x58] sm:$0xff]
  %v139 = vld [vmem:[%s1 + $0x60] sm:$0xff]
  %v140 = vld [vmem:[%s1 + $0x68] sm:$0xff]
  %v141 = vld [vmem:[%s1 + $0x70] sm:$0xff]
  %v142 = vld [vmem:[%s1 + $0x78] sm:$0xff]
  %s143 = scalar_lea.vmem %s1, 128
  %v144 = vld [vmem:[%s143] sm:$0xff]
  %v145 = vld [vmem:[%s143 + $0x8] sm:$0xff]
  %v146 = vld [vmem:[%s143 + $0x10] sm:$0xff]
  %v147 = vld [vmem:[%s143 + $0x18] sm:$0xff]
  %v148 = vld [vmem:[%s143 + $0x20] sm:$0xff]
  %v149 = vld [vmem:[%s143 + $0x28] sm:$0xff]
  %v150 = vld [vmem:[%s143 + $0x30] sm:$0xff]
  %v151 = vld [vmem:[%s143 + $0x38] sm:$0xff]
  %v152 = vld [vmem:[%s143 + $0x40] sm:$0xff]
  %v153 = vld [vmem:[%s143 + $0x48] sm:$0xff]
  %v154 = vld [vmem:[%s143 + $0x50] sm:$0xff]
  %v155 = vld [vmem:[%s143 + $0x58] sm:$0xff]
  %v156 = vld [vmem:[%s143 + $0x60] sm:$0xff]
  %v157 = vld [vmem:[%s143 + $0x68] sm:$0xff]
  %v158 = vld [vmem:[%s143 + $0x70] sm:$0xff]
  %v159 = vld [vmem:[%s143 + $0x78] sm:$0xff]
  %160 = vmatprep.subr.mxu0 0.0
  %161 = vmatpush1.msra.mxu0 %v144
  %162 = vmatprep.subr.mxu0 0.0
  %163 = vmatpush1.msra.mxu0 %v145
  %164 = vmatprep.subr.mxu0 0.0
  %165 = vmatpush1.msra.mxu0 %v146
  %166 = vmatprep.subr.mxu0 0.0
  %167 = vmatpush1.msra.mxu0 %v147
  %168 = vmatprep.subr.mxu0 0.0
  %169 = vmatpush1.msra.mxu0 %v148
  %170 = vmatprep.subr.mxu0 0.0
  %171 = vmatpush1.msra.mxu0 %v149
  %172 = vmatprep.subr.mxu0 0.0
  %173 = vmatpush1.msra.mxu0 %v150
  %174 = vmatprep.subr.mxu0 0.0
  %175 = vmatpush1.msra.mxu0 %v151
  %176 = vmatprep.subr.mxu0 0.0
  %177 = vmatpush1.msra.mxu0 %v152
  %178 = vmatprep.subr.mxu0 0.0
  %179 = vmatpush1.msra.mxu0 %v153
  %180 = vmatprep.subr.mxu0 0.0
  %181 = vmatpush1.msra.mxu0 %v154
  %182 = vmatprep.subr.mxu0 0.0
  %183 = vmatpush1.msra.mxu0 %v155
  %184 = vmatprep.subr.mxu0 0.0
  %185 = vmatpush1.msra.mxu0 %v156
  %186 = vmatprep.subr.mxu0 0.0
  %187 = vmatpush1.msra.mxu0 %v157
  %188 = vmatprep.subr.mxu0 0.0
  %189 = vmatpush1.msra.mxu0 %v158
  %190 = vmatprep.subr.mxu0 0.0
  %191 = vmatpush1.msra.mxu0 %v159
  %192 = vmatprep.subr.mxu0 0.0
  %193 = vmatpush1.msra.mxu0 0.0
  %194 = vmatprep.subr.mxu0 0.0
  %195 = vmatpush1.msra.mxu0 0.0
  %196 = vmatprep.subr.mxu0 0.0
  %197 = vmatpush1.msra.mxu0 0.0
  %198 = vmatprep.subr.mxu0 0.0
  %199 = vmatpush1.msra.mxu0 0.0
  %200 = vmatprep.subr.mxu0 0.0
  %201 = vmatpush1.msra.mxu0 0.0
  %202 = vmatprep.subr.mxu0 0.0
  %203 = vmatpush1.msra.mxu0 0.0
  %204 = vmatprep.subr.mxu0 0.0
  %205 = vmatpush1.msra.mxu0 0.0
  %206 = vmatprep.subr.mxu0 0.0
  %207 = vmatpush1.msra.mxu0 0.0
  %208 = vmatprep.subr.mxu0 0.0
  %209 = vmatpush1.msra.mxu0 0.0
  %210 = vmatprep.subr.mxu0 0.0
  %211 = vmatpush1.msra.mxu0 0.0
  %212 = vmatprep.subr.mxu0 0.0
  %213 = vmatpush1.msra.mxu0 0.0
  %214 = vmatprep.subr.mxu0 0.0
  %215 = vmatpush1.msra.mxu0 0.0
  %216 = vmatprep.subr.mxu0 0.0
  %217 = vmatpush1.msra.mxu0 0.0
  %218 = vmatprep.subr.mxu0 0.0
  %219 = vmatpush1.msra.mxu0 0.0
  %220 = vmatprep.subr.mxu0 0.0
  %221 = vmatpush1.msra.mxu0 0.0
  %222 = vmatprep.subr.mxu0 0.0
  %223 = vmatpush1.msra.mxu0 0.0
  %224 = vmatprep.mubr.f32.mxu0 0.0
  %225 = vmatmul.mubr.f32.gmra.mrb[0].mxu0 %v11
  %v226 = vpop.f32.mrb[0].mxu0
  %v227 = vadd.f32 0.0, %v226
  %v228 = vpop.f32.mrb[0].mxu0
  %229 = vmatprep.mubr.f32.mxu0 0.0
  %230 = vmatmul.mubr.f32.gmra.mrb[0].mxu0 %v12
  %v231 = vpop.f32.mrb[0].mxu0
  %v232 = vadd.f32 0.0, %v231
  %v233 = vpop.f32.mrb[0].mxu0
  %234 = vmatprep.mubr.f32.mxu0 0.0
  %235 = vmatmul.mubr.f32.gmra.mrb[0].mxu0 %v13
  %v236 = vpop.f32.mrb[0].mxu0
  %v237 = vadd.f32 0.0, %v236
  %v238 = vpop.f32.mrb[0].mxu0
  %239 = vmatprep.mubr.f32.mxu0 0.0
  %240 = vmatmul.mubr.f32.gmra.mrb[0].mxu0 %v14
  %v241 = vpop.f32.mrb[0].mxu0
  %v242 = vadd.f32 0.0, %v241
  %v243 = vpop.f32.mrb[0].mxu0
  %244 = vmatprep.mubr.f32.mxu0 0.0
  %245 = vmatmul.mubr.f32.gmra.mrb[0].mxu0 %v15
  %v246 = vpop.f32.mrb[0].mxu0
  %v247 = vadd.f32 0.0, %v246
  %v248 = vpop.f32.mrb[0].mxu0
  %249 = vmatprep.mubr.f32.mxu0 0.0
  %250 = vmatmul.mubr.f32.gmra.mrb[0].mxu0 %v16
  %v251 = vpop.f32.mrb[0].mxu0
  %v252 = vadd.f32 0.0, %v251
  %v253 = vpop.f32.mrb[0].mxu0
  %254 = vmatprep.mubr.f32.mxu0 0.0
  %255 = vmatmul.mubr.f32.gmra.mrb[0].mxu0 %v17
  %v256 = vpop.f32.mrb[0].mxu0
  %v257 = vadd.f32 0.0, %v256
  %v258 = vpop.f32.mrb[0].mxu0
  %259 = vmatprep.mubr.f32.mxu0 0.0
  %260 = vmatmul.mubr.f32.gmra.mrb[0].mxu0 %v18
  %v261 = vpop.f32.mrb[0].mxu0
  %v262 = vadd.f32 0.0, %v261
  %v263 = vpop.f32.mrb[0].mxu0
  %264 = vmatprep.mubr.f32.mxu0 0.0
  %265 = vmatmul.mubr.f32.gmra.mrb[0].mxu0 %v19
  %v266 = vpop.f32.mrb[0].mxu0
  %v267 = vadd.f32 0.0, %v266
  %v268 = vpop.f32.mrb[0].mxu0
  %269 = vmatprep.mubr.f32.mxu0 0.0
  %270 = vmatmul.mubr.f32.gmra.mrb[0].mxu0 %v20
  %v271 = vpop.f32.mrb[0].mxu0
  %v272 = vadd.f32 0.0, %v271
  %v273 = vpop.f32.mrb[0].mxu0
  %274 = vmatprep.mubr.f32.mxu0 0.0
  %275 = vmatmul.mubr.f32.gmra.mrb[0].mxu0 %v21
  %v276 = vpop.f32.mrb[0].mxu0
  %v277 = vadd.f32 0.0, %v276
  %v278 = vpop.f32.mrb[0].mxu0
  %279 = vmatprep.mubr.f32.mxu0 0.0
  %280 = vmatmul.mubr.f32.gmra.mrb[0].mxu0 %v22
  %v281 = vpop.f32.mrb[0].mxu0
  %v282 = vadd.f32 0.0, %v281
  %v283 = vpop.f32.mrb[0].mxu0
  %284 = vmatprep.mubr.f32.mxu0 0.0
  %285 = vmatmul.mubr.f32.gmra.mrb[0].mxu0 %v23
  %v286 = vpop.f32.mrb[0].mxu0
  %v287 = vadd.f32 0.0, %v286
  %v288 = vpop.f32.mrb[0].mxu0
  %289 = vmatprep.mubr.f32.mxu0 0.0
  %290 = vmatmul.mubr.f32.gmra.mrb[0].mxu0 %v24
  %v291 = vpop.f32.mrb[0].mxu0
  %v292 = vadd.f32 0.0, %v291
  %v293 = vpop.f32.mrb[0].mxu0
  %294 = vdwg.mxu0
  %295 = vmatprep.subr.mxu0 0.0
  %296 = vmatpush1.msra.mxu0 %v127
  %297 = vmatprep.subr.mxu0 0.0
  %298 = vmatpush1.msra.mxu0 %v128
  %299 = vmatprep.subr.mxu0 0.0
  %300 = vmatpush1.msra.mxu0 %v129
  %301 = vmatprep.subr.mxu0 0.0
  %302 = vmatpush1.msra.mxu0 %v130
  %303 = vmatprep.subr.mxu0 0.0
  %304 = vmatpush1.msra.mxu0 %v131
  %305 = vmatprep.subr.mxu0 0.0
  %306 = vmatpush1.msra.mxu0 %v132
  %307 = vmatprep.subr.mxu0 0.0
  %308 = vmatpush1.msra.mxu0 %v133
  %309 = vmatprep.subr.mxu0 0.0
  %310 = vmatpush1.msra.mxu0 %v134
  %311 = vmatprep.subr.mxu0 0.0
  %312 = vmatpush1.msra.mxu0 %v135
  %313 = vmatprep.subr.mxu0 0.0
  %314 = vmatpush1.msra.mxu0 %v136
  %315 = vmatprep.subr.mxu0 0.0
  %316 = vmatpush1.msra.mxu0 %v137
  %317 = vmatprep.subr.mxu0 0.0
  %318 = vmatpush1.msra.mxu0 %v138
  %319 = vmatprep.subr.mxu0 0.0
  %320 = vmatpush1.msra.mxu0 %v139
  %321 = vmatprep.subr.mxu0 0.0
  %322 = vmatpush1.msra.mxu0 %v140
  %323 = vmatprep.subr.mxu0 0.0
  %324 = vmatpush1.msra.mxu0 %v141
  %325 = vmatprep.subr.mxu0 0.0
  %326 = vmatpush1.msra.mxu0 %v142
  %327 = vmatprep.subr.mxu0 0.0
  %328 = vmatpush1.msra.mxu0 0.0
  %329 = vmatprep.subr.mxu0 0.0
  %330 = vmatpush1.msra.mxu0 0.0
  %331 = vmatprep.subr.mxu0 0.0
  %332 = vmatpush1.msra.mxu0 0.0
  %333 = vmatprep.subr.mxu0 0.0
  %334 = vmatpush1.msra.mxu0 0.0
  %335 = vmatprep.subr.mxu0 0.0
  %336 = vmatpush1.msra.mxu0 0.0
  %337 = vmatprep.subr.mxu0 0.0
  %338 = vmatpush1.msra.mxu0 0.0
  %339 = vmatprep.subr.mxu0 0.0
  %340 = vmatpush1.msra.mxu0 0.0
  %341 = vmatprep.subr.mxu0 0.0
  %342 = vmatpush1.msra.mxu0 0.0
  %343 = vmatprep.subr.mxu0 0.0
  %344 = vmatpush1.msra.mxu0 0.0
  %345 = vmatprep.subr.mxu0 0.0
  %346 = vmatpush1.msra.mxu0 0.0
  %347 = vmatprep.subr.mxu0 0.0
  %348 = vmatpush1.msra.mxu0 0.0
  %349 = vmatprep.subr.mxu0 0.0
  %350 = vmatpush1.msra.mxu0 0.0
  %351 = vmatprep.subr.mxu0 0.0
  %352 = vmatpush1.msra.mxu0 0.0
  %353 = vmatprep.subr.mxu0 0.0
  %354 = vmatpush1.msra.mxu0 0.0
  %355 = vmatprep.subr.mxu0 0.0
  %356 = vmatpush1.msra.mxu0 0.0
  %357 = vmatprep.subr.mxu0 0.0
  %358 = vmatpush1.msra.mxu0 0.0
  %359 = vmatprep.mubr.f32.mxu0 0.0
  %360 = vmatmul.mubr.f32.gmra.mrb[0].mxu0 %v82
  %v361 = vpop.f32.mrb[0].mxu0
  %v362 = vadd.f32 %v227, %v361
  %v363 = vpop.f32.mrb[0].mxu0
  %364 = vmatprep.mubr.f32.mxu0 0.0
  %365 = vmatmul.mubr.f32.gmra.mrb[0].mxu0 %v44
  %v366 = vpop.f32.mrb[0].mxu0
  %v367 = vadd.f32 %v232, %v366
  %v368 = vpop.f32.mrb[0].mxu0
  %369 = vmatprep.mubr.f32.mxu0 0.0
  %370 = vmatmul.mubr.f32.gmra.mrb[0].mxu0 %v46
  %v371 = vpop.f32.mrb[0].mxu0
  %v372 = vadd.f32 %v237, %v371
  %v373 = vpop.f32.mrb[0].mxu0
  %374 = vmatprep.mubr.f32.mxu0 0.0
  %375 = vmatmul.mubr.f32.gmra.mrb[0].mxu0 %v48
  %v376 = vpop.f32.mrb[0].mxu0
  %v377 = vadd.f32 %v242, %v376
  %v378 = vpop.f32.mrb[0].mxu0
  %379 = vmatprep.mubr.f32.mxu0 0.0
  %380 = vmatmul.mubr.f32.gmra.mrb[0].mxu0 %v50
  %v381 = vpop.f32.mrb[0].mxu0
  %v382 = vadd.f32 %v247, %v381
  %v383 = vpop.f32.mrb[0].mxu0
  %384 = vmatprep.mubr.f32.mxu0 0.0
  %385 = vmatmul.mubr.f32.gmra.mrb[0].mxu0 %v52
  %v386 = vpop.f32.mrb[0].mxu0
  %v387 = vadd.f32 %v252, %v386
  %v388 = vpop.f32.mrb[0].mxu0
  %389 = vmatprep.mubr.f32.mxu0 0.0
  %390 = vmatmul.mubr.f32.gmra.mrb[0].mxu0 %v54
  %v391 = vpop.f32.mrb[0].mxu0
  %v392 = vadd.f32 %v257, %v391
  %v393 = vpop.f32.mrb[0].mxu0
  %394 = vmatprep.mubr.f32.mxu0 0.0
  %395 = vmatmul.mubr.f32.gmra.mrb[0].mxu0 %v56
  %v396 = vpop.f32.mrb[0].mxu0
  %v397 = vadd.f32 %v262, %v396
  %v398 = vpop.f32.mrb[0].mxu0
  %399 = vmatprep.mubr.f32.mxu0 0.0
  %400 = vmatmul.mubr.f32.gmra.mrb[0].mxu0 %v58
  %v401 = vpop.f32.mrb[0].mxu0
  %v402 = vadd.f32 %v267, %v401
  %v403 = vpop.f32.mrb[0].mxu0
  %404 = vmatprep.mubr.f32.mxu0 0.0
  %405 = vmatmul.mubr.f32.gmra.mrb[0].mxu0 %v60
  %v406 = vpop.f32.mrb[0].mxu0
  %v407 = vadd.f32 %v272, %v406
  %v408 = vpop.f32.mrb[0].mxu0
  %409 = vmatprep.mubr.f32.mxu0 0.0
  %410 = vmatmul.mubr.f32.gmra.mrb[0].mxu0 %v62
  %v411 = vpop.f32.mrb[0].mxu0
  %v412 = vadd.f32 %v277, %v411
  %v413 = vpop.f32.mrb[0].mxu0
  %414 = vmatprep.mubr.f32.mxu0 0.0
  %415 = vmatmul.mubr.f32.gmra.mrb[0].mxu0 %v64
  %v416 = vpop.f32.mrb[0].mxu0
  %v417 = vadd.f32 %v282, %v416
  %v418 = vpop.f32.mrb[0].mxu0
  %419 = vmatprep.mubr.f32.mxu0 0.0
  %420 = vmatmul.mubr.f32.gmra.mrb[0].mxu0 %v66
  %v421 = vpop.f32.mrb[0].mxu0
  %v422 = vadd.f32 %v287, %v421
  %v423 = vpop.f32.mrb[0].mxu0
  %424 = vmatprep.mubr.f32.mxu0 0.0
  %425 = vmatmul.mubr.f32.gmra.mrb[0].mxu0 %v67
  %v426 = vpop.f32.mrb[0].mxu0
  %v427 = vadd.f32 %v292, %v426
  %v428 = vpop.f32.mrb[0].mxu0
  %429 = vdwg.mxu0
  %s430 = scalar_lea.vmem %s1, 256
  %v431 = vld [vmem:[%s430] sm:$0xff]
  %v432 = vld [vmem:[%s430 + $0x8] sm:$0xff]
  %v433 = vld [vmem:[%s430 + $0x10] sm:$0xff]
  %v434 = vld [vmem:[%s430 + $0x18] sm:$0xff]
  %v435 = vld [vmem:[%s430 + $0x20] sm:$0xff]
  %v436 = vld [vmem:[%s430 + $0x28] sm:$0xff]
  %v437 = vld [vmem:[%s430 + $0x30] sm:$0xff]
  %v438 = vld [vmem:[%s430 + $0x38] sm:$0xff]
  %v439 = vld [vmem:[%s430 + $0x40] sm:$0xff]
  %v440 = vld [vmem:[%s430 + $0x48] sm:$0xff]
  %v441 = vld [vmem:[%s430 + $0x50] sm:$0xff]
  %v442 = vld [vmem:[%s430 + $0x58] sm:$0xff]
  %v443 = vld [vmem:[%s430 + $0x60] sm:$0xff]
  %v444 = vld [vmem:[%s430 + $0x68] sm:$0xff]
  %v445 = vld [vmem:[%s430 + $0x70] sm:$0xff]
  %v446 = vld [vmem:[%s430 + $0x78] sm:$0xff]
  %447 = vmatprep.subr.mxu0 0.0
  %448 = vmatpush1.msra.mxu0 %v431
  %449 = vmatprep.subr.mxu0 0.0
  %450 = vmatpush1.msra.mxu0 %v432
  %451 = vmatprep.subr.mxu0 0.0
  %452 = vmatpush1.msra.mxu0 %v433
  %453 = vmatprep.subr.mxu0 0.0
  %454 = vmatpush1.msra.mxu0 %v434
  %455 = vmatprep.subr.mxu0 0.0
  %456 = vmatpush1.msra.mxu0 %v435
  %457 = vmatprep.subr.mxu0 0.0
  %458 = vmatpush1.msra.mxu0 %v436
  %459 = vmatprep.subr.mxu0 0.0
  %460 = vmatpush1.msra.mxu0 %v437
  %461 = vmatprep.subr.mxu0 0.0
  %462 = vmatpush1.msra.mxu0 %v438
  %463 = vmatprep.subr.mxu0 0.0
  %464 = vmatpush1.msra.mxu0 %v439
  %465 = vmatprep.subr.mxu0 0.0
  %466 = vmatpush1.msra.mxu0 %v440
  %467 = vmatprep.subr.mxu0 0.0
  %468 = vmatpush1.msra.mxu0 %v441
  %469 = vmatprep.subr.mxu0 0.0
  %470 = vmatpush1.msra.mxu0 %v442
  %471 = vmatprep.subr.mxu0 0.0
  %472 = vmatpush1.msra.mxu0 %v443
  %473 = vmatprep.subr.mxu0 0.0
  %474 = vmatpush1.msra.mxu0 %v444
  %475 = vmatprep.subr.mxu0 0.0
  %476 = vmatpush1.msra.mxu0 %v445
  %477 = vmatprep.subr.mxu0 0.0
  %478 = vmatpush1.msra.mxu0 %v446
  %479 = vmatprep.subr.mxu0 0.0
  %480 = vmatpush1.msra.mxu0 0.0
  %481 = vmatprep.subr.mxu0 0.0
  %482 = vmatpush1.msra.mxu0 0.0
  %483 = vmatprep.subr.mxu0 0.0
  %484 = vmatpush1.msra.mxu0 0.0
  %485 = vmatprep.subr.mxu0 0.0
  %486 = vmatpush1.msra.mxu0 0.0
  %487 = vmatprep.subr.mxu0 0.0
  %488 = vmatpush1.msra.mxu0 0.0
  %489 = vmatprep.subr.mxu0 0.0
  %490 = vmatpush1.msra.mxu0 0.0
  %491 = vmatprep.subr.mxu0 0.0
  %492 = vmatpush1.msra.mxu0 0.0
  %493 = vmatprep.subr.mxu0 0.0
  %494 = vmatpush1.msra.mxu0 0.0
  %495 = vmatprep.subr.mxu0 0.0
  %496 = vmatpush1.msra.mxu0 0.0
  %497 = vmatprep.subr.mxu0 0.0
  %498 = vmatpush1.msra.mxu0 0.0
  %499 = vmatprep.subr.mxu0 0.0
  %500 = vmatpush1.msra.mxu0 0.0
  %501 = vmatprep.subr.mxu0 0.0
  %502 = vmatpush1.msra.mxu0 0.0
  %503 = vmatprep.subr.mxu0 0.0
  %504 = vmatpush1.msra.mxu0 0.0
  %505 = vmatprep.subr.mxu0 0.0
  %506 = vmatpush1.msra.mxu0 0.0
  %507 = vmatprep.subr.mxu0 0.0
  %508 = vmatpush1.msra.mxu0 0.0
  %509 = vmatprep.subr.mxu0 0.0
  %510 = vmatpush1.msra.mxu0 0.0
  %511 = vmatprep.mubr.f32.mxu0 0.0
  %512 = vmatmul.mubr.f32.gmra.mrb[0].mxu0 %v86
  %v513 = vpop.f32.mrb[0].mxu0
  %v514 = vadd.f32 0.0, %v513
  %v515 = vpop.f32.mrb[0].mxu0
  %516 = vmatprep.mubr.f32.mxu0 0.0
  %517 = vmatmul.mubr.f32.gmra.mrb[0].mxu0 %v88
  %v518 = vpop.f32.mrb[0].mxu0
  %v519 = vadd.f32 0.0, %v518
  %v520 = vpop.f32.mrb[0].mxu0
  %521 = vmatprep.mubr.f32.mxu0 0.0
  %522 = vmatmul.mubr.f32.gmra.mrb[0].mxu0 %v90
  %v523 = vpop.f32.mrb[0].mxu0
  %v524 = vadd.f32 0.0, %v523
  %v525 = vpop.f32.mrb[0].mxu0
  %526 = vmatprep.mubr.f32.mxu0 0.0
  %527 = vmatmul.mubr.f32.gmra.mrb[0].mxu0 %v92
  %v528 = vpop.f32.mrb[0].mxu0
  %v529 = vadd.f32 0.0, %v528
  %v530 = vpop.f32.mrb[0].mxu0
  %531 = vmatprep.mubr.f32.mxu0 0.0
  %532 = vmatmul.mubr.f32.gmra.mrb[0].mxu0 %v94
  %v533 = vpop.f32.mrb[0].mxu0
  %v534 = vadd.f32 0.0, %v533
  %v535 = vpop.f32.mrb[0].mxu0
  %536 = vmatprep.mubr.f32.mxu0 0.0
  %537 = vmatmul.mubr.f32.gmra.mrb[0].mxu0 %v96
  %v538 = vpop.f32.mrb[0].mxu0
  %v539 = vadd.f32 0.0, %v538
  %v540 = vpop.f32.mrb[0].mxu0
  %541 = vmatprep.mubr.f32.mxu0 0.0
  %542 = vmatmul.mubr.f32.gmra.mrb[0].mxu0 %v98
  %v543 = vpop.f32.mrb[0].mxu0
  %v544 = vadd.f32 0.0, %v543
  %v545 = vpop.f32.mrb[0].mxu0
  %546 = vmatprep.mubr.f32.mxu0 0.0
  %547 = vmatmul.mubr.f32.gmra.mrb[0].mxu0 %v100
  %v548 = vpop.f32.mrb[0].mxu0
  %v549 = vadd.f32 0.0, %v548
  %v550 = vpop.f32.mrb[0].mxu0
  %551 = vmatprep.mubr.f32.mxu0 0.0
  %552 = vmatmul.mubr.f32.gmra.mrb[0].mxu0 %v102
  %v553 = vpop.f32.mrb[0].mxu0
  %v554 = vadd.f32 0.0, %v553
  %v555 = vpop.f32.mrb[0].mxu0
  %556 = vmatprep.mubr.f32.mxu0 0.0
  %557 = vmatmul.mubr.f32.gmra.mrb[0].mxu0 %v104
  %v558 = vpop.f32.mrb[0].mxu0
  %v559 = vadd.f32 0.0, %v558
  %v560 = vpop.f32.mrb[0].mxu0
  %561 = vmatprep.mubr.f32.mxu0 0.0
  %562 = vmatmul.mubr.f32.gmra.mrb[0].mxu0 %v106
  %v563 = vpop.f32.mrb[0].mxu0
  %v564 = vadd.f32 0.0, %v563
  %v565 = vpop.f32.mrb[0].mxu0
  %566 = vmatprep.mubr.f32.mxu0 0.0
  %567 = vmatmul.mubr.f32.gmra.mrb[0].mxu0 %v108
  %v568 = vpop.f32.mrb[0].mxu0
  %v569 = vadd.f32 0.0, %v568
  %v570 = vpop.f32.mrb[0].mxu0
  %571 = vmatprep.mubr.f32.mxu0 0.0
  %572 = vmatmul.mubr.f32.gmra.mrb[0].mxu0 %v110
  %v573 = vpop.f32.mrb[0].mxu0
  %v574 = vadd.f32 0.0, %v573
  %v575 = vpop.f32.mrb[0].mxu0
  %576 = vmatprep.mubr.f32.mxu0 0.0
  %577 = vmatmul.mubr.f32.gmra.mrb[0].mxu0 %v126
  %v578 = vpop.f32.mrb[0].mxu0
  %v579 = vadd.f32 0.0, %v578
  %v580 = vpop.f32.mrb[0].mxu0
  %581 = vdwg.mxu0
  %v582 = vadd.f32 %v362, %v514
  %v583 = vadd.f32 %v367, %v519
  %v584 = vadd.f32 %v372, %v524
  %v585 = vadd.f32 %v377, %v529
  %v586 = vadd.f32 %v382, %v534
  %v587 = vadd.f32 %v387, %v539
  %v588 = vadd.f32 %v392, %v544
  %v589 = vadd.f32 %v397, %v549
  %v590 = vadd.f32 %v402, %v554
  %v591 = vadd.f32 %v407, %v559
  %v592 = vadd.f32 %v412, %v564
  %v593 = vadd.f32 %v417, %v569
  %v594 = vadd.f32 %v422, %v574
  %v595 = vadd.f32 %v427, %v579
  %s596 = scalar_lea.vmem %s1, 384
  %v597 = vld [vmem:[%s596] sm:$0xff]
  %v598 = vld [vmem:[%s596 + $0x8] sm:$0xff]
  %v599 = vld [vmem:[%s596 + $0x10] sm:$0xff]
  %v600 = vld [vmem:[%s596 + $0x18] sm:$0xff]
  %v601 = vld [vmem:[%s596 + $0x20] sm:$0xff]
  %v602 = vld [vmem:[%s596 + $0x28] sm:$0xff]
  %v603 = vld [vmem:[%s596 + $0x30] sm:$0xff]
  %v604 = vld [vmem:[%s596 + $0x38] sm:$0xff]
  %v605 = vld [vmem:[%s596 + $0x40] sm:$0xff]
  %v606 = vld [vmem:[%s596 + $0x48] sm:$0xff]
  %v607 = vld [vmem:[%s596 + $0x50] sm:$0xff]
  %v608 = vld [vmem:[%s596 + $0x58] sm:$0xff]
  %v609 = vld [vmem:[%s596 + $0x60] sm:$0xff]
  %v610 = vld [vmem:[%s596 + $0x68] sm:$0xff]
  %v611 = vld [vmem:[%s596 + $0x70] sm:$0xff]
  %v612 = vld [vmem:[%s596 + $0x78] sm:$0xff]
  %s613 = scalar_lea.vmem %s1, 512
  %v614 = vld [vmem:[%s613] sm:$0xff]
  %v615 = vld [vmem:[%s613 + $0x8] sm:$0xff]
  %v616 = vld [vmem:[%s613 + $0x10] sm:$0xff]
  %v617 = vld [vmem:[%s613 + $0x18] sm:$0xff]
  %v618 = vld [vmem:[%s613 + $0x20] sm:$0xff]
  %v619 = vld [vmem:[%s613 + $0x28] sm:$0xff]
  %v620 = vld [vmem:[%s613 + $0x30] sm:$0xff]
  %v621 = vld [vmem:[%s613 + $0x38] sm:$0xff]
  %v622 = vld [vmem:[%s613 + $0x40] sm:$0xff]
  %v623 = vld [vmem:[%s613 + $0x48] sm:$0xff]
  %v624 = vld [vmem:[%s613 + $0x50] sm:$0xff]
  %v625 = vld [vmem:[%s613 + $0x58] sm:$0xff]
  %v626 = vld [vmem:[%s613 + $0x60] sm:$0xff]
  %v627 = vld [vmem:[%s613 + $0x68] sm:$0xff]
  %v628 = vld [vmem:[%s613 + $0x70] sm:$0xff]
  %v629 = vld [vmem:[%s613 + $0x78] sm:$0xff]
  %630 = vmatprep.subr.mxu0 0.0
  %631 = vmatpush1.msra.mxu0 %v614
  %632 = vmatprep.subr.mxu0 0.0
  %633 = vmatpush1.msra.mxu0 %v615
  %634 = vmatprep.subr.mxu0 0.0
  %635 = vmatpush1.msra.mxu0 %v616
  %636 = vmatprep.subr.mxu0 0.0
  %637 = vmatpush1.msra.mxu0 %v617
  %638 = vmatprep.subr.mxu0 0.0
  %639 = vmatpush1.msra.mxu0 %v618
  %640 = vmatprep.subr.mxu0 0.0
  %641 = vmatpush1.msra.mxu0 %v619
  %642 = vmatprep.subr.mxu0 0.0
  %643 = vmatpush1.msra.mxu0 %v620
  %644 = vmatprep.subr.mxu0 0.0
  %645 = vmatpush1.msra.mxu0 %v621
  %646 = vmatprep.subr.mxu0 0.0
  %647 = vmatpush1.msra.mxu0 %v622
  %648 = vmatprep.subr.mxu0 0.0
  %649 = vmatpush1.msra.mxu0 %v623
  %650 = vmatprep.subr.mxu0 0.0
  %651 = vmatpush1.msra.mxu0 %v624
  %652 = vmatprep.subr.mxu0 0.0
  %653 = vmatpush1.msra.mxu0 %v625
  %654 = vmatprep.subr.mxu0 0.0
  %655 = vmatpush1.msra.mxu0 %v626
  %656 = vmatprep.subr.mxu0 0.0
  %657 = vmatpush1.msra.mxu0 %v627
  %658 = vmatprep.subr.mxu0 0.0
  %659 = vmatpush1.msra.mxu0 %v628
  %660 = vmatprep.subr.mxu0 0.0
  %661 = vmatpush1.msra.mxu0 %v629
  %662 = vmatprep.subr.mxu0 0.0
  %663 = vmatpush1.msra.mxu0 0.0
  %664 = vmatprep.subr.mxu0 0.0
  %665 = vmatpush1.msra.mxu0 0.0
  %666 = vmatprep.subr.mxu0 0.0
  %667 = vmatpush1.msra.mxu0 0.0
  %668 = vmatprep.subr.mxu0 0.0
  %669 = vmatpush1.msra.mxu0 0.0
  %670 = vmatprep.subr.mxu0 0.0
  %671 = vmatpush1.msra.mxu0 0.0
  %672 = vmatprep.subr.mxu0 0.0
  %673 = vmatpush1.msra.mxu0 0.0
  %674 = vmatprep.subr.mxu0 0.0
  %675 = vmatpush1.msra.mxu0 0.0
  %676 = vmatprep.subr.mxu0 0.0
  %677 = vmatpush1.msra.mxu0 0.0
  %678 = vmatprep.subr.mxu0 0.0
  %679 = vmatpush1.msra.mxu0 0.0
  %680 = vmatprep.subr.mxu0 0.0
  %681 = vmatpush1.msra.mxu0 0.0
  %682 = vmatprep.subr.mxu0 0.0
  %683 = vmatpush1.msra.mxu0 0.0
  %684 = vmatprep.subr.mxu0 0.0
  %685 = vmatpush1.msra.mxu0 0.0
  %686 = vmatprep.subr.mxu0 0.0
  %687 = vmatpush1.msra.mxu0 0.0
  %688 = vmatprep.subr.mxu0 0.0
  %689 = vmatpush1.msra.mxu0 0.0
  %690 = vmatprep.subr.mxu0 0.0
  %691 = vmatpush1.msra.mxu0 0.0
  %692 = vmatprep.subr.mxu0 0.0
  %693 = vmatpush1.msra.mxu0 0.0
  %694 = vmatprep.mubr.f32.mxu0 0.0
  %695 = vmatmul.mubr.f32.gmra.mrb[0].mxu0 %v11
  %v696 = vpop.f32.mrb[0].mxu0
  %v697 = vadd.f32 0.0, %v696
  %v698 = vpop.f32.mrb[0].mxu0
  %699 = vmatprep.mubr.f32.mxu0 0.0
  %700 = vmatmul.mubr.f32.gmra.mrb[0].mxu0 %v12
  %v701 = vpop.f32.mrb[0].mxu0
  %v702 = vadd.f32 0.0, %v701
  %v703 = vpop.f32.mrb[0].mxu0
  %704 = vmatprep.mubr.f32.mxu0 0.0
  %705 = vmatmul.mubr.f32.gmra.mrb[0].mxu0 %v13
  %v706 = vpop.f32.mrb[0].mxu0
  %v707 = vadd.f32 0.0, %v706
  %v708 = vpop.f32.mrb[0].mxu0
  %709 = vmatprep.mubr.f32.mxu0 0.0
  %710 = vmatmul.mubr.f32.gmra.mrb[0].mxu0 %v14
  %v711 = vpop.f32.mrb[0].mxu0
  %v712 = vadd.f32 0.0, %v711
  %v713 = vpop.f32.mrb[0].mxu0
  %714 = vmatprep.mubr.f32.mxu0 0.0
  %715 = vmatmul.mubr.f32.gmra.mrb[0].mxu0 %v15
  %v716 = vpop.f32.mrb[0].mxu0
  %v717 = vadd.f32 0.0, %v716
  %v718 = vpop.f32.mrb[0].mxu0
  %719 = vmatprep.mubr.f32.mxu0 0.0
  %720 = vmatmul.mubr.f32.gmra.mrb[0].mxu0 %v16
  %v721 = vpop.f32.mrb[0].mxu0
  %v722 = vadd.f32 0.0, %v721
  %v723 = vpop.f32.mrb[0].mxu0
  %724 = vmatprep.mubr.f32.mxu0 0.0
  %725 = vmatmul.mubr.f32.gmra.mrb[0].mxu0 %v17
  %v726 = vpop.f32.mrb[0].mxu0
  %v727 = vadd.f32 0.0, %v726
  %v728 = vpop.f32.mrb[0].mxu0
  %729 = vmatprep.mubr.f32.mxu0 0.0
  %730 = vmatmul.mubr.f32.gmra.mrb[0].mxu0 %v18
  %v731 = vpop.f32.mrb[0].mxu0
  %v732 = vadd.f32 0.0, %v731
  %v733 = vpop.f32.mrb[0].mxu0
  %734 = vmatprep.mubr.f32.mxu0 0.0
  %735 = vmatmul.mubr.f32.gmra.mrb[0].mxu0 %v19
  %v736 = vpop.f32.mrb[0].mxu0
  %v737 = vadd.f32 0.0, %v736
  %v738 = vpop.f32.mrb[0].mxu0
  %739 = vmatprep.mubr.f32.mxu0 0.0
  %740 = vmatmul.mubr.f32.gmra.mrb[0].mxu0 %v20
  %v741 = vpop.f32.mrb[0].mxu0
  %v742 = vadd.f32 0.0, %v741
  %v743 = vpop.f32.mrb[0].mxu0
  %744 = vmatprep.mubr.f32.mxu0 0.0
  %745 = vmatmul.mubr.f32.gmra.mrb[0].mxu0 %v21
  %v746 = vpop.f32.mrb[0].mxu0
  %v747 = vadd.f32 0.0, %v746
  %v748 = vpop.f32.mrb[0].mxu0
  %749 = vmatprep.mubr.f32.mxu0 0.0
  %750 = vmatmul.mubr.f32.gmra.mrb[0].mxu0 %v22
  %v751 = vpop.f32.mrb[0].mxu0
  %v752 = vadd.f32 0.0, %v751
  %v753 = vpop.f32.mrb[0].mxu0
  %754 = vmatprep.mubr.f32.mxu0 0.0
  %755 = vmatmul.mubr.f32.gmra.mrb[0].mxu0 %v23
  %v756 = vpop.f32.mrb[0].mxu0
  %v757 = vadd.f32 0.0, %v756
  %v758 = vpop.f32.mrb[0].mxu0
  %759 = vmatprep.mubr.f32.mxu0 0.0
  %760 = vmatmul.mubr.f32.gmra.mrb[0].mxu0 %v24
  %v761 = vpop.f32.mrb[0].mxu0
  %v762 = vadd.f32 0.0, %v761
  %v763 = vpop.f32.mrb[0].mxu0
  %764 = vdwg.mxu0
  %765 = vmatprep.subr.mxu0 0.0
  %766 = vmatpush1.msra.mxu0 %v597
  %767 = vmatprep.subr.mxu0 0.0
  %768 = vmatpush1.msra.mxu0 %v598
  %769 = vmatprep.subr.mxu0 0.0
  %770 = vmatpush1.msra.mxu0 %v599
  %771 = vmatprep.subr.mxu0 0.0
  %772 = vmatpush1.msra.mxu0 %v600
  %773 = vmatprep.subr.mxu0 0.0
  %774 = vmatpush1.msra.mxu0 %v601
  %775 = vmatprep.subr.mxu0 0.0
  %776 = vmatpush1.msra.mxu0 %v602
  %777 = vmatprep.subr.mxu0 0.0
  %778 = vmatpush1.msra.mxu0 %v603
  %779 = vmatprep.subr.mxu0 0.0
  %780 = vmatpush1.msra.mxu0 %v604
  %781 = vmatprep.subr.mxu0 0.0
  %782 = vmatpush1.msra.mxu0 %v605
  %783 = vmatprep.subr.mxu0 0.0
  %784 = vmatpush1.msra.mxu0 %v606
  %785 = vmatprep.subr.mxu0 0.0
  %786 = vmatpush1.msra.mxu0 %v607
  %787 = vmatprep.subr.mxu0 0.0
  %788 = vmatpush1.msra.mxu0 %v608
  %789 = vmatprep.subr.mxu0 0.0
  %790 = vmatpush1.msra.mxu0 %v609
  %791 = vmatprep.subr.mxu0 0.0
  %792 = vmatpush1.msra.mxu0 %v610
  %793 = vmatprep.subr.mxu0 0.0
  %794 = vmatpush1.msra.mxu0 %v611
  %795 = vmatprep.subr.mxu0 0.0
  %796 = vmatpush1.msra.mxu0 %v612
  %797 = vmatprep.subr.mxu0 0.0
  %798 = vmatpush1.msra.mxu0 0.0
  %799 = vmatprep.subr.mxu0 0.0
  %800 = vmatpush1.msra.mxu0 0.0
  %801 = vmatprep.subr.mxu0 0.0
  %802 = vmatpush1.msra.mxu0 0.0
  %803 = vmatprep.subr.mxu0 0.0
  %804 = vmatpush1.msra.mxu0 0.0
  %805 = vmatprep.subr.mxu0 0.0
  %806 = vmatpush1.msra.mxu0 0.0
  %807 = vmatprep.subr.mxu0 0.0
  %808 = vmatpush1.msra.mxu0 0.0
  %809 = vmatprep.subr.mxu0 0.0
  %810 = vmatpush1.msra.mxu0 0.0
  %811 = vmatprep.subr.mxu0 0.0
  %812 = vmatpush1.msra.mxu0 0.0
  %813 = vmatprep.subr.mxu0 0.0
  %814 = vmatpush1.msra.mxu0 0.0
  %815 = vmatprep.subr.mxu0 0.0
  %816 = vmatpush1.msra.mxu0 0.0
  %817 = vmatprep.subr.mxu0 0.0
  %818 = vmatpush1.msra.mxu0 0.0
  %819 = vmatprep.subr.mxu0 0.0
  %820 = vmatpush1.msra.mxu0 0.0
  %821 = vmatprep.subr.mxu0 0.0
  %822 = vmatpush1.msra.mxu0 0.0
  %823 = vmatprep.subr.mxu0 0.0
  %824 = vmatpush1.msra.mxu0 0.0
  %825 = vmatprep.subr.mxu0 0.0
  %826 = vmatpush1.msra.mxu0 0.0
  %827 = vmatprep.subr.mxu0 0.0
  %828 = vmatpush1.msra.mxu0 0.0
  %829 = vmatprep.mubr.f32.mxu0 0.0
  %830 = vmatmul.mubr.f32.gmra.mrb[0].mxu0 %v82
  %v831 = vpop.f32.mrb[0].mxu0
  %v832 = vadd.f32 %v697, %v831
  %v833 = vpop.f32.mrb[0].mxu0
  %834 = vmatprep.mubr.f32.mxu0 0.0
  %835 = vmatmul.mubr.f32.gmra.mrb[0].mxu0 %v44
  %v836 = vpop.f32.mrb[0].mxu0
  %v837 = vadd.f32 %v702, %v836
  %v838 = vpop.f32.mrb[0].mxu0
  %839 = vmatprep.mubr.f32.mxu0 0.0
  %840 = vmatmul.mubr.f32.gmra.mrb[0].mxu0 %v46
  %v841 = vpop.f32.mrb[0].mxu0
  %v842 = vadd.f32 %v707, %v841
  %v843 = vpop.f32.mrb[0].mxu0
  %844 = vmatprep.mubr.f32.mxu0 0.0
  %845 = vmatmul.mubr.f32.gmra.mrb[0].mxu0 %v48
  %v846 = vpop.f32.mrb[0].mxu0
  %v847 = vadd.f32 %v712, %v846
  %v848 = vpop.f32.mrb[0].mxu0
  %849 = vmatprep.mubr.f32.mxu0 0.0
  %850 = vmatmul.mubr.f32.gmra.mrb[0].mxu0 %v50
  %v851 = vpop.f32.mrb[0].mxu0
  %v852 = vadd.f32 %v717, %v851
  %v853 = vpop.f32.mrb[0].mxu0
  %854 = vmatprep.mubr.f32.mxu0 0.0
  %855 = vmatmul.mubr.f32.gmra.mrb[0].mxu0 %v52
  %v856 = vpop.f32.mrb[0].mxu0
  %v857 = vadd.f32 %v722, %v856
  %v858 = vpop.f32.mrb[0].mxu0
  %859 = vmatprep.mubr.f32.mxu0 0.0
  %860 = vmatmul.mubr.f32.gmra.mrb[0].mxu0 %v54
  %v861 = vpop.f32.mrb[0].mxu0
  %v862 = vadd.f32 %v727, %v861
  %v863 = vpop.f32.mrb[0].mxu0
  %864 = vmatprep.mubr.f32.mxu0 0.0
  %865 = vmatmul.mubr.f32.gmra.mrb[0].mxu0 %v56
  %v866 = vpop.f32.mrb[0].mxu0
  %v867 = vadd.f32 %v732, %v866
  %v868 = vpop.f32.mrb[0].mxu0
  %869 = vmatprep.mubr.f32.mxu0 0.0
  %870 = vmatmul.mubr.f32.gmra.mrb[0].mxu0 %v58
  %v871 = vpop.f32.mrb[0].mxu0
  %v872 = vadd.f32 %v737, %v871
  %v873 = vpop.f32.mrb[0].mxu0
  %874 = vmatprep.mubr.f32.mxu0 0.0
  %875 = vmatmul.mubr.f32.gmra.mrb[0].mxu0 %v60
  %v876 = vpop.f32.mrb[0].mxu0
  %v877 = vadd.f32 %v742, %v876
  %v878 = vpop.f32.mrb[0].mxu0
  %879 = vmatprep.mubr.f32.mxu0 0.0
  %880 = vmatmul.mubr.f32.gmra.mrb[0].mxu0 %v62
  %v881 = vpop.f32.mrb[0].mxu0
  %v882 = vadd.f32 %v747, %v881
  %v883 = vpop.f32.mrb[0].mxu0
  %884 = vmatprep.mubr.f32.mxu0 0.0
  %885 = vmatmul.mubr.f32.gmra.mrb[0].mxu0 %v64
  %v886 = vpop.f32.mrb[0].mxu0
  %v887 = vadd.f32 %v752, %v886
  %v888 = vpop.f32.mrb[0].mxu0
  %889 = vmatprep.mubr.f32.mxu0 0.0
  %890 = vmatmul.mubr.f32.gmra.mrb[0].mxu0 %v66
  %v891 = vpop.f32.mrb[0].mxu0
  %v892 = vadd.f32 %v757, %v891
  %v893 = vpop.f32.mrb[0].mxu0
  %894 = vmatprep.mubr.f32.mxu0 0.0
  %895 = vmatmul.mubr.f32.gmra.mrb[0].mxu0 %v67
  %v896 = vpop.f32.mrb[0].mxu0
  %v897 = vadd.f32 %v762, %v896
  %v898 = vpop.f32.mrb[0].mxu0
  %899 = vdwg.mxu0
  %s900 = scalar_lea.vmem %s1, 640
  %v901 = vld [vmem:[%s900] sm:$0xff]
  %v902 = vld [vmem:[%s900 + $0x8] sm:$0xff]
  %v903 = vld [vmem:[%s900 + $0x10] sm:$0xff]
  %v904 = vld [vmem:[%s900 + $0x18] sm:$0xff]
  %v905 = vld [vmem:[%s900 + $0x20] sm:$0xff]
  %v906 = vld [vmem:[%s900 + $0x28] sm:$0xff]
  %v907 = vld [vmem:[%s900 + $0x30] sm:$0xff]
  %v908 = vld [vmem:[%s900 + $0x38] sm:$0xff]
  %v909 = vld [vmem:[%s900 + $0x40] sm:$0xff]
  %v910 = vld [vmem:[%s900 + $0x48] sm:$0xff]
  %v911 = vld [vmem:[%s900 + $0x50] sm:$0xff]
  %v912 = vld [vmem:[%s900 + $0x58] sm:$0xff]
  %v913 = vld [vmem:[%s900 + $0x60] sm:$0xff]
  %v914 = vld [vmem:[%s900 + $0x68] sm:$0xff]
  %v915 = vld [vmem:[%s900 + $0x70] sm:$0xff]
  %v916 = vld [vmem:[%s900 + $0x78] sm:$0xff]
  %917 = vmatprep.subr.mxu0 0.0
  %918 = vmatpush1.msra.mxu0 %v901
  %919 = vmatprep.subr.mxu0 0.0
  %920 = vmatpush1.msra.mxu0 %v902
  %921 = vmatprep.subr.mxu0 0.0
  %922 = vmatpush1.msra.mxu0 %v903
  %923 = vmatprep.subr.mxu0 0.0
  %924 = vmatpush1.msra.mxu0 %v904
  %925 = vmatprep.subr.mxu0 0.0
  %926 = vmatpush1.msra.mxu0 %v905
  %927 = vmatprep.subr.mxu0 0.0
  %928 = vmatpush1.msra.mxu0 %v906
  %929 = vmatprep.subr.mxu0 0.0
  %930 = vmatpush1.msra.mxu0 %v907
  %931 = vmatprep.subr.mxu0 0.0
  %932 = vmatpush1.msra.mxu0 %v908
  %933 = vmatprep.subr.mxu0 0.0
  %934 = vmatpush1.msra.mxu0 %v909
  %935 = vmatprep.subr.mxu0 0.0
  %936 = vmatpush1.msra.mxu0 %v910
  %937 = vmatprep.subr.mxu0 0.0
  %938 = vmatpush1.msra.mxu0 %v911
  %939 = vmatprep.subr.mxu0 0.0
  %940 = vmatpush1.msra.mxu0 %v912
  %941 = vmatprep.subr.mxu0 0.0
  %942 = vmatpush1.msra.mxu0 %v913
  %943 = vmatprep.subr.mxu0 0.0
  %944 = vmatpush1.msra.mxu0 %v914
  %945 = vmatprep.subr.mxu0 0.0
  %946 = vmatpush1.msra.mxu0 %v915
  %947 = vmatprep.subr.mxu0 0.0
  %948 = vmatpush1.msra.mxu0 %v916
  %949 = vmatprep.subr.mxu0 0.0
  %950 = vmatpush1.msra.mxu0 0.0
  %951 = vmatprep.subr.mxu0 0.0
  %952 = vmatpush1.msra.mxu0 0.0
  %953 = vmatprep.subr.mxu0 0.0
  %954 = vmatpush1.msra.mxu0 0.0
  %955 = vmatprep.subr.mxu0 0.0
  %956 = vmatpush1.msra.mxu0 0.0
  %957 = vmatprep.subr.mxu0 0.0
  %958 = vmatpush1.msra.mxu0 0.0
  %959 = vmatprep.subr.mxu0 0.0
  %960 = vmatpush1.msra.mxu0 0.0
  %961 = vmatprep.subr.mxu0 0.0
  %962 = vmatpush1.msra.mxu0 0.0
  %963 = vmatprep.subr.mxu0 0.0
  %964 = vmatpush1.msra.mxu0 0.0
  %965 = vmatprep.subr.mxu0 0.0
  %966 = vmatpush1.msra.mxu0 0.0
  %967 = vmatprep.subr.mxu0 0.0
  %968 = vmatpush1.msra.mxu0 0.0
  %969 = vmatprep.subr.mxu0 0.0
  %970 = vmatpush1.msra.mxu0 0.0
  %971 = vmatprep.subr.mxu0 0.0
  %972 = vmatpush1.msra.mxu0 0.0
  %973 = vmatprep.subr.mxu0 0.0
  %974 = vmatpush1.msra.mxu0 0.0
  %975 = vmatprep.subr.mxu0 0.0
  %976 = vmatpush1.msra.mxu0 0.0
  %977 = vmatprep.subr.mxu0 0.0
  %978 = vmatpush1.msra.mxu0 0.0
  %979 = vmatprep.subr.mxu0 0.0
  %980 = vmatpush1.msra.mxu0 0.0
  %981 = vmatprep.mubr.f32.mxu0 0.0
  %982 = vmatmul.mubr.f32.gmra.mrb[0].mxu0 %v86
  %v983 = vpop.f32.mrb[0].mxu0
  %v984 = vadd.f32 0.0, %v983
  %v985 = vpop.f32.mrb[0].mxu0
  %986 = vmatprep.mubr.f32.mxu0 0.0
  %987 = vmatmul.mubr.f32.gmra.mrb[0].mxu0 %v88
  %v988 = vpop.f32.mrb[0].mxu0
  %v989 = vadd.f32 0.0, %v988
  %v990 = vpop.f32.mrb[0].mxu0
  %991 = vmatprep.mubr.f32.mxu0 0.0
  %992 = vmatmul.mubr.f32.gmra.mrb[0].mxu0 %v90
  %v993 = vpop.f32.mrb[0].mxu0
  %v994 = vadd.f32 0.0, %v993
  %v995 = vpop.f32.mrb[0].mxu0
  %996 = vmatprep.mubr.f32.mxu0 0.0
  %997 = vmatmul.mubr.f32.gmra.mrb[0].mxu0 %v92
  %v998 = vpop.f32.mrb[0].mxu0
  %v999 = vadd.f32 0.0, %v998
  %v1000 = vpop.f32.mrb[0].mxu0
  %1001 = vmatprep.mubr.f32.mxu0 0.0
  %1002 = vmatmul.mubr.f32.gmra.mrb[0].mxu0 %v94
  %v1003 = vpop.f32.mrb[0].mxu0
  %v1004 = vadd.f32 0.0, %v1003
  %v1005 = vpop.f32.mrb[0].mxu0
  %1006 = vmatprep.mubr.f32.mxu0 0.0
  %1007 = vmatmul.mubr.f32.gmra.mrb[0].mxu0 %v96
  %v1008 = vpop.f32.mrb[0].mxu0
  %v1009 = vadd.f32 0.0, %v1008
  %v1010 = vpop.f32.mrb[0].mxu0
  %1011 = vmatprep.mubr.f32.mxu0 0.0
  %1012 = vmatmul.mubr.f32.gmra.mrb[0].mxu0 %v98
  %v1013 = vpop.f32.mrb[0].mxu0
  %v1014 = vadd.f32 0.0, %v1013
  %v1015 = vpop.f32.mrb[0].mxu0
  %1016 = vmatprep.mubr.f32.mxu0 0.0
  %1017 = vmatmul.mubr.f32.gmra.mrb[0].mxu0 %v100
  %v1018 = vpop.f32.mrb[0].mxu0
  %v1019 = vadd.f32 0.0, %v1018
  %v1020 = vpop.f32.mrb[0].mxu0
  %1021 = vmatprep.mubr.f32.mxu0 0.0
  %1022 = vmatmul.mubr.f32.gmra.mrb[0].mxu0 %v102
  %v1023 = vpop.f32.mrb[0].mxu0
  %v1024 = vadd.f32 0.0, %v1023
  %v1025 = vpop.f32.mrb[0].mxu0
  %1026 = vmatprep.mubr.f32.mxu0 0.0
  %1027 = vmatmul.mubr.f32.gmra.mrb[0].mxu0 %v104
  %v1028 = vpop.f32.mrb[0].mxu0
  %v1029 = vadd.f32 0.0, %v1028
  %v1030 = vpop.f32.mrb[0].mxu0
  %1031 = vmatprep.mubr.f32.mxu0 0.0
  %1032 = vmatmul.mubr.f32.gmra.mrb[0].mxu0 %v106
  %v1033 = vpop.f32.mrb[0].mxu0
  %v1034 = vadd.f32 0.0, %v1033
  %v1035 = vpop.f32.mrb[0].mxu0
  %1036 = vmatprep.mubr.f32.mxu0 0.0
  %1037 = vmatmul.mubr.f32.gmra.mrb[0].mxu0 %v108
  %v1038 = vpop.f32.mrb[0].mxu0
  %v1039 = vadd.f32 0.0, %v1038
  %v1040 = vpop.f32.mrb[0].mxu0
  %1041 = vmatprep.mubr.f32.mxu0 0.0
  %1042 = vmatmul.mubr.f32.gmra.mrb[0].mxu0 %v110
  %v1043 = vpop.f32.mrb[0].mxu0
  %v1044 = vadd.f32 0.0, %v1043
  %v1045 = vpop.f32.mrb[0].mxu0
  %1046 = vmatprep.mubr.f32.mxu0 0.0
  %1047 = vmatmul.mubr.f32.gmra.mrb[0].mxu0 %v126
  %v1048 = vpop.f32.mrb[0].mxu0
  %v1049 = vadd.f32 0.0, %v1048
  %v1050 = vpop.f32.mrb[0].mxu0
  %1051 = vdwg.mxu0
  %v1052 = vadd.f32 %v832, %v984
  %v1053 = vadd.f32 %v837, %v989
  %v1054 = vadd.f32 %v842, %v994
  %v1055 = vadd.f32 %v847, %v999
  %v1056 = vadd.f32 %v852, %v1004
  %v1057 = vadd.f32 %v857, %v1009
  %v1058 = vadd.f32 %v862, %v1014
  %v1059 = vadd.f32 %v867, %v1019
  %v1060 = vadd.f32 %v872, %v1024
  %v1061 = vadd.f32 %v877, %v1029
  %v1062 = vadd.f32 %v882, %v1034
  %v1063 = vadd.f32 %v887, %v1039
  %v1064 = vadd.f32 %v892, %v1044
  %v1065 = vadd.f32 %v897, %v1049
  %v1066 = vadd.f32 %v582, %v1058
  %1067 = vst [vmem:[%s2] sm:$0xff] %v1066
  %v1068 = vadd.f32 %v583, %v1052
  %v1069 = vadd.f32 %v584, %v1053
  %v1070 = vadd.f32 %v585, %v1054
  %v1071 = vadd.f32 %v586, %v1055
  %v1072 = vadd.f32 %v587, %v1056
  %v1073 = vadd.f32 %v588, %v1057
  %1074 = vst [vmem:[%s2 + $0x8] sm:$0xff] %v1068
  %1075 = vst [vmem:[%s2 + $0x10] sm:$0xff] %v1069
  %1076 = vst [vmem:[%s2 + $0x18] sm:$0xff] %v1070
  %1077 = vst [vmem:[%s2 + $0x20] sm:$0xff] %v1071
  %1078 = vst [vmem:[%s2 + $0x28] sm:$0xff] %v1072
  %1079 = vst [vmem:[%s2 + $0x30] sm:$0xff] %v1073
  %v1080 = vadd.f32 %v589, %v1065
  %1081 = vst [vmem:[%s2 + $0x38] sm:$0xff] %v1080
  %v1082 = vadd.f32 %v590, %v1059
  %v1083 = vadd.f32 %v591, %v1060
  %v1084 = vadd.f32 %v592, %v1061
  %v1085 = vadd.f32 %v593, %v1062
  %v1086 = vadd.f32 %v594, %v1063
  %v1087 = vadd.f32 %v595, %v1064
  %1088 = vst [vmem:[%s2 + $0x40] sm:$0xff] %v1082
  %1089 = vst [vmem:[%s2 + $0x48] sm:$0xff] %v1083
  %1090 = vst [vmem:[%s2 + $0x50] sm:$0xff] %v1084
  %1091 = vst [vmem:[%s2 + $0x58] sm:$0xff] %v1085
  %1092 = vst [vmem:[%s2 + $0x60] sm:$0xff] %v1086
  %1093 = vst [vmem:[%s2 + $0x68] sm:$0xff] %v1087
  // Predicated region
  $region10: #{kernel_generated_6_forward.1} parent=0 // pred_check
    _
  $region11: #{kernel_generated_6_forward.1} parent=0 // pred_check_branch
    %1095 = sbr.rel (0) target = $region13
  $region12: #{kernel_generated_6_forward.1} parent=0 // pred_region
    _
  $region13: #{kernel_generated_6_forward.1} parent=0 // pred_fallthru
    _
  // Predicated region
  $region14: #{kernel_generated_6_forward.1} parent=0 // pred_check
    _
  $region15: #{kernel_generated_6_forward.1} parent=0 // pred_check_branch
    %1097 = sbr.rel (0) target = $region17
  $region16: #{kernel_generated_6_forward.1} parent=0 // pred_region
    _
  $region17: #{kernel_generated_6_forward.1} parent=0 // pred_fallthru
    _

</llo_original>
